<compile_context>
chip_gen: v7x
topology: tpu7x:2x2x1
jax: 0.10.0
libtpu: 0.0.40
codegen_flags: <defaults>
</compile_context>

<pallas_src>
import math
import functools

import jax
import jax.numpy as jnp
from jax.experimental import pallas as pl
from jax.experimental.pallas import tpu as pltpu


def _round_up(x, m):
    return ((x + m - 1) // m) * m


def _select_tiles(in_size, out_size, tn_target, tk_target):
    # Lane-aligned (multiple-of-128) weight tiles, capped at the targets.
    tn = min(tn_target, _round_up(out_size, 128))
    tk = min(tk_target, _round_up(in_size, 128))
    return tn, tk


def prepare_dense_mlp_weight(weight, *, tn_target=1024, tk_target=4096):
    """One-time weight prep: cast to the bf16 streaming dtype and pad to the
    tile-aligned (N_pad, K_pad) shape.

    Call this once per weight (outside the per-step forward) so the cast+pad
    pass over HBM is amortized across all forward calls; the forward then
    touches the weight exactly once (the kernel's streaming pass).  Zero
    K-padding is exact; padded N rows only produce output columns the forward
    slices away.
    """
    out_size, in_size = weight.shape
    tn, tk = _select_tiles(in_size, out_size, tn_target, tk_target)
    n_pad = _round_up(out_size, tn)
    k_pad = _round_up(in_size, tk)
    w = weight.astype(jnp.bfloat16)
    if (n_pad, k_pad) != (out_size, in_size):
        w = jnp.pad(w, ((0, n_pad - out_size), (0, k_pad - in_size)))
    return w


def _dense_mlp_kernel(x_ref, w_ref, o_ref, acc_ref, *, tk, x_resident):
    # x_ref: (B_pad, K_pad) f32 fully resident across the whole grid (or a
    #        streamed (B_pad, tk) tile when x is too large to keep resident).
    # w_ref: (tn, tk) bf16 tile in native [out, in] layout, streamed from HBM.
    # Contract the shared K axis directly; no transpose of the weight.
    k = pl.program_id(1)

    @pl.when(k == 0)
    def _():
        acc_ref[...] = jnp.zeros_like(acc_ref)

    if x_resident:
        k_start = pl.multiple_of(k * tk, 128)
        x_tile = x_ref[:, pl.ds(k_start, tk)]
    else:
        x_tile = x_ref[...]
    # Tiny (B_pad, tk) slice; cast to bf16 so the MXU runs its native bf16
    # path against the bf16 weight tile with f32 accumulation.
    x_tile = x_tile.astype(jnp.bfloat16)

    acc_ref[...] += jax.lax.dot_general(
        x_tile,
        w_ref[...],
        dimension_numbers=(((1,), (1,)), ((), ())),
        preferred_element_type=jnp.float32,
    )

    @pl.when(k == pl.num_programs(1) - 1)
    def _():
        # TODO(synk): if bias/threshold/mask ever enter the forward, fuse them
        # here on the (B_pad, tn) tile (VPU slots are idle in this mem-bound
        # matmul).
        o_ref[...] = acc_ref[...].astype(o_ref.dtype)


@functools.partial(jax.jit, static_argnames=("out_size", "tn_target", "tk_target"))
def dense_mlp_forward(x, weight, *, out_size=None, tn_target=1024, tk_target=4096):
    """Forward of DenseMLP: output = x @ weight.T.

    `weight` may be either:
      * the raw PyTorch-layout [out_size, in_size] tensor (any float dtype):
        it is cast to bf16 and tile-padded on the fly (one extra HBM pass per
        call), or
      * the output of prepare_dense_mlp_weight() (bf16, tile-aligned): the
        fast path; pass the true `out_size` explicitly in that case.

    bias / threshold / mask are unused in the reference forward.
    """
    B, in_size = x.shape
    if out_size is None:
        out_size = int(weight.shape[0])

    tn, tk = _select_tiles(in_size, out_size, tn_target, tk_target)
    n_pad = _round_up(out_size, tn)
    k_pad = _round_up(in_size, tk)

    if weight.shape == (n_pad, k_pad) and weight.dtype == jnp.bfloat16:
        w = weight  # pre-prepared fast path: no per-call pass over the weight
    elif weight.shape == (out_size, in_size):
        w = prepare_dense_mlp_weight(weight, tn_target=tn_target, tk_target=tk_target)
    else:
        raise ValueError(
            f"weight shape {weight.shape} matches neither the raw "
            f"({out_size}, {in_size}) nor the prepared ({n_pad}, {k_pad}) layout"
        )

    # x is tiny (B x in_size); zero-pad it to sublane/tile-aligned shape
    # (exact: padded K is zero in both operands, padded rows are sliced away).
    B_pad = max(8, _round_up(B, 8))
    if (B_pad, k_pad) != (B, in_size):
        x = jnp.pad(x, ((0, B_pad - B), (0, k_pad - in_size)))

    n_grid = n_pad // tn
    k_grid = k_pad // tk

    # Keep the whole padded x resident in VMEM (DMA'd once) while it is small;
    # otherwise stream (B_pad, tk) tiles along K.
    # TODO(synk): if B ever grows to thousands, add an M grid axis
    # (tm=128/256) and tile x / acc / out over it instead.
    x_resident = B_pad * k_pad * x.dtype.itemsize <= 4 * 1024 * 1024
    if x_resident:
        x_spec = pl.BlockSpec((B_pad, k_pad), lambda j, k: (0, 0))
    else:
        x_spec = pl.BlockSpec((B_pad, tk), lambda j, k: (0, k))

    # Deeper weight pipeline: there is essentially no compute to hide DMA
    # under, so keep the DMA engine continuously fed.  3 x 8 MiB bf16 buffers
    # at the default tiles fit v7x's 64 MiB/TC VMEM with headroom.
    if n_grid * k_grid >= 3:
        w_spec = pl.BlockSpec(
            (tn, tk), lambda j, k: (j, k),
            pipeline_mode=pl.Buffered(buffer_count=3),
        )
    else:
        w_spec = pl.BlockSpec((tn, tk), lambda j, k: (j, k))

    w_bytes = n_pad * k_pad * w.dtype.itemsize
    x_bytes = B_pad * k_pad * x.dtype.itemsize
    o_bytes = B_pad * n_pad * x.dtype.itemsize

    out = pl.pallas_call(
        functools.partial(_dense_mlp_kernel, tk=tk, x_resident=x_resident),
        out_shape=jax.ShapeDtypeStruct((B_pad, n_pad), x.dtype),
        grid_spec=pltpu.PrefetchScalarGridSpec(
            num_scalar_prefetch=0,
            grid=(n_grid, k_grid),
            in_specs=[
                x_spec,   # x resident (or streamed along K when large)
                w_spec,   # weight streamed tile-by-tile in native (out, in) bf16
            ],
            out_specs=pl.BlockSpec((B_pad, tn), lambda j, k: (0, j)),
            scratch_shapes=[pltpu.VMEM((B_pad, tn), jnp.float32)],
        ),
        compiler_params=pltpu.CompilerParams(
            # N axis parallel (megacore sharding on v7x; if n_grid == 1 one
            # core idles, which is fine for a purely HBM-bound stream).
            # K reduction axis last, "arbitrary".
            dimension_semantics=("parallel", "arbitrary"),
            # Safe on all gens: under v7x's 64 MiB/TC physical VMEM, plenty on
            # v5e/v6e's 128 MiB.
            vmem_limit_bytes=56 * 1024 * 1024,
        ),
        cost_estimate=pl.CostEstimate(
            flops=2 * B_pad * n_pad * k_pad,
            transcendentals=0,
            bytes_accessed=w_bytes + x_bytes + o_bytes,
        ),
    )(x, w)

    return out[:B, :out_size]


def init_dense_mlp_params(key, in_size, out_size):
    """Deterministic parameter init mirroring DenseMLP.__init__ shapes.

    weight:    (out_size, in_size) kaiming_uniform(a=sqrt(5)) -> U(+-1/sqrt(fan_in))
    bias:      (out_size,)         U(+-1/sqrt(fan_in))   (unused in forward)
    threshold: (1,)                zeros                 (unused in forward)
    mask:      (in_size,)          ones                  (unused in forward)
    """
    kw, kb = jax.random.split(key)
    fan_in = in_size
    bound = 1.0 / math.sqrt(fan_in)
    weight = jax.random.uniform(
        kw, (out_size, in_size), jnp.float32, minval=-bound, maxval=bound
    )
    bias = jax.random.uniform(
        kb, (out_size,), jnp.float32, minval=-bound, maxval=bound
    )
    threshold = jnp.zeros((1,), jnp.float32)
    mask = jnp.ones((in_size,), jnp.float32)
    return weight, bias, threshold, mask


if __name__ == "__main__":
    key = jax.random.PRNGKey(0)
    k_x, k_p = jax.random.split(key)

    # Shapes implied by the module's forward: input [B, in_size], weight
    # [out_size, in_size].
    B, in_size, out_size = 8, 128, 256
    x = jax.random.normal(k_x, (B, in_size), jnp.float32)
    weight, bias, threshold, mask = init_dense_mlp_params(k_p, in_size, out_size)

    # Fast path: weight prepared (bf16 + tile-aligned) once, amortized.
    w_prep = jax.block_until_ready(prepare_dense_mlp_weight(weight))
    out = jax.block_until_ready(dense_mlp_forward(x, w_prep, out_size=out_size))
    assert out.shape == (B, out_size)

    # Exact reference for the bf16-operand / f32-accumulate compute.
    ref_bf = (x.astype(jnp.bfloat16).astype(jnp.float32)
              @ weight.astype(jnp.bfloat16).astype(jnp.float32).T)
    assert jnp.allclose(out, ref_bf, atol=1e-3, rtol=1e-3)
    # Sanity vs the original f32 forward (bf16 weight-streaming tolerance).
    assert jnp.allclose(out, x @ weight.T, atol=5e-2, rtol=5e-2)

    # Non-aligned shapes through the raw-weight fallback (on-the-fly prep).
    B2, in2, out2 = 5, 300, 700
    x2 = jax.random.normal(k_x, (B2, in2), jnp.float32)
    w2, _, _, _ = init_dense_mlp_params(k_p, in2, out2)
    out2_v = jax.block_until_ready(dense_mlp_forward(x2, w2))
    ref2 = (x2.astype(jnp.bfloat16).astype(jnp.float32)
            @ w2.astype(jnp.bfloat16).astype(jnp.float32).T)
    assert out2_v.shape == (B2, out2)
    assert jnp.allclose(out2_v, ref2, atol=1e-3, rtol=1e-3)
    assert jnp.allclose(out2_v, x2 @ w2.T, atol=5e-2, rtol=5e-2)

    # Small tiles to force a multi-tile (N, K) grid: exercises the K-loop
    # accumulator, N tiling, and the 3-deep weight pipeline.
    out3_v = jax.block_until_ready(
        dense_mlp_forward(x2, w2, tn_target=128, tk_target=128)
    )
    assert out3_v.shape == (B2, out2)
    assert jnp.allclose(out3_v, ref2, atol=1e-3, rtol=1e-3)

    print("KERNEL_OK")
</pallas_src>

<mosaic_0001>
module attributes {stable_mosaic.version = 11 : i64} {
  func.func @_dense_mlp_kernel(%arg0: i32, %arg1: i32, %arg2: memref<8x128xf32, #tpu.memory_space<vmem>>, %arg3: memref<256x128xbf16, #tpu.memory_space<vmem>>, %arg4: memref<8x256xf32, #tpu.memory_space<vmem>>, %arg5: memref<8x256xf32, #tpu.memory_space<vmem>>) attributes {dimension_semantics = [#tpu.dimension_semantics<parallel>, #tpu.dimension_semantics<arbitrary>], iteration_bounds = array<i64: 1, 1>, scalar_prefetch = 0 : i64, scratch_operands = 1 : i64, tpu.core_type = #tpu.core_type<tc>, window_params = [{pipeline_mode = #tpu.pipeline_mode<synchronous>, transform_indices = @transform_0, window_bounds = array<i64: 8, 128>}, {transform_indices = @transform_1, window_bounds = array<i64: 256, 128>}, {transform_indices = @transform_2, window_bounds = array<i64: 8, 256>}]} {
    %c0_i32 = arith.constant 0 : i32
    %0 = arith.cmpi eq, %arg1, %c0_i32 : i32
    %1 = arith.extui %0 : i1 to i32
    %c0_i32_0 = arith.constant 0 : i32
    %2 = arith.cmpi ne, %1, %c0_i32_0 : i32
    scf.if %2 {
      %cst_9 = arith.constant 0.000000e+00 : f32
      %16 = vector.broadcast %cst_9 : f32 to vector<8x256xf32>
      %c0_10 = arith.constant 0 : index
      %c0_11 = arith.constant 0 : index
      %17 = vector.load %arg5[%c0_10, %c0_11] : memref<8x256xf32, #tpu.memory_space<vmem>>, vector<8x256xf32>
      tpu.vector_store %arg5[%c0_10, %c0_11], %16 {strides = array<i32>} : memref<8x256xf32, #tpu.memory_space<vmem>>, vector<8x256xf32>,
    } else {
    }
    %c128_i32 = arith.constant 128 : i32
    %3 = arith.muli %arg1, %c128_i32 : i32
    %4 = tpu.assume_multiple %3, 128 : i32
    %c0 = arith.constant 0 : index
    %5 = arith.index_cast %4 : i32 to index
    %6 = vector.load %arg2[%c0, %5] : memref<8x128xf32, #tpu.memory_space<vmem>>, vector<8x128xf32>
    %7 = arith.truncf %6 : vector<8x128xf32> to vector<8x128xbf16>
    %c0_1 = arith.constant 0 : index
    %c0_2 = arith.constant 0 : index
    %8 = vector.load %arg5[%c0_1, %c0_2] : memref<8x256xf32, #tpu.memory_space<vmem>>, vector<8x256xf32>
    %c0_3 = arith.constant 0 : index
    %c0_4 = arith.constant 0 : index
    %9 = vector.load %arg3[%c0_3, %c0_4] : memref<256x128xbf16, #tpu.memory_space<vmem>>, vector<256x128xbf16>
    %cst = arith.constant dense<0.000000e+00> : vector<8x256xf32>
    %10 = tpu.matmul %7, %9, %cst {dimension_numbers = #tpu.dot_dimension_numbers<[1], [1], [0], [0], [0, 0, 1, 0], [], []>} : vector<8x128xbf16>, vector<256x128xbf16>, vector<8x256xf32> -> vector<8x256xf32>
    %11 = arith.addf %8, %10 : vector<8x256xf32>
    %c0_5 = arith.constant 0 : index
    %c0_6 = arith.constant 0 : index
    %12 = vector.load %arg5[%c0_5, %c0_6] : memref<8x256xf32, #tpu.memory_space<vmem>>, vector<8x256xf32>
    tpu.vector_store %arg5[%c0_5, %c0_6], %11 {strides = array<i32>} : memref<8x256xf32, #tpu.memory_space<vmem>>, vector<8x256xf32>,
    %c0_i32_7 = arith.constant 0 : i32
    %13 = arith.cmpi eq, %arg1, %c0_i32_7 : i32
    %14 = arith.extui %13 : i1 to i32
    %c0_i32_8 = arith.constant 0 : i32
    %15 = arith.cmpi ne, %14, %c0_i32_8 : i32
    scf.if %15 {
      %c0_9 = arith.constant 0 : index
      %c0_10 = arith.constant 0 : index
      %16 = vector.load %arg5[%c0_9, %c0_10] : memref<8x256xf32, #tpu.memory_space<vmem>>, vector<8x256xf32>
      %c0_11 = arith.constant 0 : index
      %c0_12 = arith.constant 0 : index
      %17 = vector.load %arg4[%c0_11, %c0_12] : memref<8x256xf32, #tpu.memory_space<vmem>>, vector<8x256xf32>
      tpu.vector_store %arg4[%c0_11, %c0_12], %16 {strides = array<i32>} : memref<8x256xf32, #tpu.memory_space<vmem>>, vector<8x256xf32>,
    } else {
    }
    return
  }
  func.func @transform_0(%arg0: i32, %arg1: i32) -> (i32, i32) {
    %c0_i32 = arith.constant 0 : i32
    %c0_i32_0 = arith.constant 0 : i32
    %c0_i32_1 = arith.constant 0 : i32
    return %c0_i32, %c0_i32_0 : i32, i32
  }
  func.func @transform_1(%arg0: i32, %arg1: i32) -> (i32, i32) {
    %c0_i32 = arith.constant 0 : i32
    return %arg0, %arg1 : i32, i32
  }
  func.func @transform_2(%arg0: i32, %arg1: i32) -> (i32, i32) {
    %c0_i32 = arith.constant 0 : i32
    %c0_i32_0 = arith.constant 0 : i32
    return %c0_i32, %arg0 : i32, i32
  }
}

</mosaic_0001>

<llo_original>
// kernel: dense_mlp_forward.1
$region0: #{dense_mlp_forward.1}
  #allocation0 [shape = 'u32[]', space=smem, size = 0x4, offset = 0x4, fixed_abs, tag = 'smem constant byte address 0x4 - core index']
  #allocation1 [shape = 'u32[144,128]{1,0:T(1,128)}', space=vmem, size = 0x12000, scoped, tag = 'internal scratch']
  #allocation2 [shape = 'f32[8,256]{1,0:T(8,128)}', space=vmem, size = 0x2000, scoped, tag = 'scratch operand']
  %s0 = inlined_call_operand.hbm [shape: f32[8,128], index: 0, kind: input, shape index: {}]
  %s1 = inlined_call_operand.hbm [shape: bf16[256,128], index: 1, kind: input, shape index: {}]
  %s2 = inlined_call_operand.hbm [shape: f32[8,256], index: 2, kind: output, shape index: {}]
  %s3 = sld [smem:[#allocation0]]
  $region34: #{dense_mlp_forward.1} parent=0
    _
  %s5 = ssub.s32 1, %s3
  %s6 = scalar_select 0, %s5, %s3
  $region1: #{dense_mlp_forward.1} parent=0
    #allocation3 [shape = 'u8[4096]{0}', space=vmem, size = 0x1000, scoped, tag = 'input window, operand 0, single buffered']
    #allocation4 [shape = 's32[1]{0}', space=sflag, size = 0x4, scoped, tag = 'scoped memory for dense_mlp_forward.1']
    #allocation5 [shape = 's32[1]{0}', space=sflag, size = 0x4, scoped, tag = 'scoped memory for dense_mlp_forward.1']
    #allocation6 [shape = 'u8[65536]{0}', space=vmem, size = 0x10000, scoped, tag = 'input window, operand 1, single buffered']
    #allocation7 [shape = 's32[1]{0}', space=sflag, size = 0x4, scoped, tag = 'scoped memory for dense_mlp_forward.1']
    #allocation8 [shape = 'u8[8192]{0}', space=vmem, size = 0x2000, scoped, tag = 'output window, operand 0, single buffered']
    %7 = vsyncpa [#allocation4], 0
    %8 = vsyncpa [#allocation7], 0
    %9 = vsyncpa [#allocation5], 0
    // Predicated region
    $region2: #{dense_mlp_forward.1} parent=1 // pred_check
      _
    $region3: #{dense_mlp_forward.1} parent=1 // pred_check_branch
      %11 = sbr.rel (0) target = $region5
    $region4: #{dense_mlp_forward.1} parent=1 // pred_region
      %s13 = ssub.s32 128, 128
      %14 = vsyncadd [#allocation4], %s13
      %s16 = sshll.u32 [#allocation3], 4
      %s17 = int_to_ptr.vmem [resolvable:$true] %s16
      %19 = dma.hbm_to_vmem [thread:$0]  %s0, 128, %s17, [#allocation4]
    $region5: #{dense_mlp_forward.1} parent=1 // pred_fallthru
      _
    // Predicated region
    $region6: #{dense_mlp_forward.1} parent=1 // pred_check
      _
    $region7: #{dense_mlp_forward.1} parent=1 // pred_check_branch
      %21 = sbr.rel (0) target = $region9
    $region8: #{dense_mlp_forward.1} parent=1 // pred_region
      %s23 = ssub.s32 2048, 2048
      %24 = vsyncadd [#allocation7], %s23
      %s25 = sshll.u32 [#allocation6], 4
      %s26 = int_to_ptr.vmem [resolvable:$true] %s25
      %31 = dma.hbm_to_vmem [thread:$0]  %s1, 2048, %s26, [#allocation7], 64, 64, 4
    $region9: #{dense_mlp_forward.1} parent=1 // pred_fallthru
      _
    // Predicated region
    $region10: #{dense_mlp_forward.1} parent=1 // pred_check
      _
    $region11: #{dense_mlp_forward.1} parent=1 // pred_check_branch
      %33 = sbr.rel (0) target = $region13
    $region12: #{dense_mlp_forward.1} parent=1 // pred_region
      %34 = dma.done [#allocation4], 128
    $region13: #{dense_mlp_forward.1} parent=1 // pred_fallthru
      _
    // Predicated region
    $region14: #{dense_mlp_forward.1} parent=1 // pred_check
      _
    $region15: #{dense_mlp_forward.1} parent=1 // pred_check_branch
      %36 = sbr.rel (0) target = $region17
    $region16: #{dense_mlp_forward.1} parent=1 // pred_region
      %37 = dma.done [#allocation7], 2048
    $region17: #{dense_mlp_forward.1} parent=1 // pred_fallthru
      _
    %p39 = scmp.eq.s32.totalorder 0, 0
    // Predicated region
    $region18: #{dense_mlp_forward.1} parent=1 // pred_check
      %p40 = pneg %p39
    $region19: #{dense_mlp_forward.1} parent=1 // pred_check_branch
      %42 = sbr.rel (%p40) target = $region21
    $region20: #{dense_mlp_forward.1} parent=1 // pred_region
      %43 = vst [vmem:[#allocation2] sm:$0xff] 0.0
      %44 = vst [vmem:[#allocation2 + $0x8] sm:$0xff] 0.0
    $region21: #{dense_mlp_forward.1} parent=1 // pred_fallthru
      _
    %s45 = smul.u32 0, 128
    %s46 = sshra.s32 %s45, 7
    %s47 = sand.u32 %s45, 127
    %s48 = scalar_lea.vmem [#allocation3], %s46
    %v49 = vld [vmem:[%s48] sm:$0xff]
    %v50 = vpack.c.bf16 %v49, %v49
    %v51 = vld [vmem:[#allocation2] sm:$0xff]
    %v52 = vld [vmem:[#allocation2 + $0x8] sm:$0xff]
    %v53 = vld [vmem:[#allocation6] sm:$0xf]
    %v54 = vld [vmem:[#allocation6 + $0x4] sm:$0xf]
    %v55 = vld [vmem:[#allocation6 + $0x8] sm:$0xf]
    %v56 = vld [vmem:[#allocation6 + $0xc] sm:$0xf]
    %v57 = vld [vmem:[#allocation6 + $0x10] sm:$0xf]
    %v58 = vld [vmem:[#allocation6 + $0x14] sm:$0xf]
    %v59 = vld [vmem:[#allocation6 + $0x18] sm:$0xf]
    %v60 = vld [vmem:[#allocation6 + $0x1c] sm:$0xf]
    %v61 = vld [vmem:[#allocation6 + $0x20] sm:$0xf]
    %v62 = vld [vmem:[#allocation6 + $0x24] sm:$0xf]
    %v63 = vld [vmem:[#allocation6 + $0x28] sm:$0xf]
    %v64 = vld [vmem:[#allocation6 + $0x2c] sm:$0xf]
    %v65 = vld [vmem:[#allocation6 + $0x30] sm:$0xf]
    %v66 = vld [vmem:[#allocation6 + $0x34] sm:$0xf]
    %v67 = vld [vmem:[#allocation6 + $0x38] sm:$0xf]
    %v68 = vld [vmem:[#allocation6 + $0x3c] sm:$0xf]
    %v69 = vld [vmem:[#allocation6 + $0x40] sm:$0xf]
    %v70 = vld [vmem:[#allocation6 + $0x44] sm:$0xf]
    %v71 = vld [vmem:[#allocation6 + $0x48] sm:$0xf]
    %v72 = vld [vmem:[#allocation6 + $0x4c] sm:$0xf]
    %v73 = vld [vmem:[#allocation6 + $0x50] sm:$0xf]
    %v74 = vld [vmem:[#allocation6 + $0x54] sm:$0xf]
    %v75 = vld [vmem:[#allocation6 + $0x58] sm:$0xf]
    %v76 = vld [vmem:[#allocation6 + $0x5c] sm:$0xf]
    %v77 = vld [vmem:[#allocation6 + $0x60] sm:$0xf]
    %v78 = vld [vmem:[#allocation6 + $0x64] sm:$0xf]
    %v79 = vld [vmem:[#allocation6 + $0x68] sm:$0xf]
    %v80 = vld [vmem:[#allocation6 + $0x6c] sm:$0xf]
    %v81 = vld [vmem:[#allocation6 + $0x70] sm:$0xf]
    %v82 = vld [vmem:[#allocation6 + $0x74] sm:$0xf]
    %v83 = vld [vmem:[#allocation6 + $0x78] sm:$0xf]
    %v84 = vld [vmem:[#allocation6 + $0x7c] sm:$0xf]
    %v117 = vunpack.c.l.b16 %v53
    %v118 = vunpack.c.l.b16 %v54
    %v119 = vunpack.c.l.b16 %v55
    %v120 = vunpack.c.l.b16 %v56
    %v121 = vunpack.c.l.b16 %v57
    %v122 = vunpack.c.l.b16 %v58
    %v123 = vunpack.c.l.b16 %v59
    %v124 = vunpack.c.l.b16 %v60
    %v125 = vunpack.c.l.b16 %v61
    %v126 = vunpack.c.l.b16 %v62
    %v127 = vunpack.c.l.b16 %v63
    %v128 = vunpack.c.l.b16 %v64
    %v129 = vunpack.c.l.b16 %v65
    %v130 = vunpack.c.l.b16 %v66
    %v131 = vunpack.c.l.b16 %v67
    %v132 = vunpack.c.l.b16 %v68
    %v133 = vunpack.c.l.b16 %v69
    %v134 = vunpack.c.l.b16 %v70
    %v135 = vunpack.c.l.b16 %v71
    %v136 = vunpack.c.l.b16 %v72
    %v137 = vunpack.c.l.b16 %v73
    %v138 = vunpack.c.l.b16 %v74
    %v139 = vunpack.c.l.b16 %v75
    %v140 = vunpack.c.l.b16 %v76
    %v141 = vunpack.c.l.b16 %v77
    %v142 = vunpack.c.l.b16 %v78
    %v143 = vunpack.c.l.b16 %v79
    %v144 = vunpack.c.l.b16 %v80
    %v145 = vunpack.c.l.b16 %v81
    %v146 = vunpack.c.l.b16 %v82
    %v147 = vunpack.c.l.b16 %v83
    %v148 = vunpack.c.l.b16 %v84
    %v149 = vpack.c.b16 %v118, %v117
    %v150 = vpack.c.b16 %v120, %v119
    %v151 = vpack.c.b16 %v122, %v121
    %v152 = vpack.c.b16 %v124, %v123
    %v153 = vpack.c.b16 %v126, %v125
    %v154 = vpack.c.b16 %v128, %v127
    %v155 = vpack.c.b16 %v130, %v129
    %v156 = vpack.c.b16 %v132, %v131
    %v157 = vpack.c.b16 %v134, %v133
    %v158 = vpack.c.b16 %v136, %v135
    %v159 = vpack.c.b16 %v138, %v137
    %v160 = vpack.c.b16 %v140, %v139
    %v161 = vpack.c.b16 %v142, %v141
    %v162 = vpack.c.b16 %v144, %v143
    %v163 = vpack.c.b16 %v146, %v145
    %v164 = vpack.c.b16 %v148, %v147
    %181 = vmatprep.subr.bf16.mxu0 0
    %182 = vmatpush1.bf16.xpose.msra.mxu0 %v149
    %183 = vmatprep.subr.bf16.mxu0 0
    %184 = vmatpush1.bf16.xpose.msra.mxu0 %v150
    %185 = vmatprep.subr.bf16.mxu0 0
    %186 = vmatpush1.bf16.xpose.msra.mxu0 %v151
    %187 = vmatprep.subr.bf16.mxu0 0
    %188 = vmatpush1.bf16.xpose.msra.mxu0 %v152
    %189 = vmatprep.subr.bf16.mxu0 0
    %190 = vmatpush1.bf16.xpose.msra.mxu0 %v153
    %191 = vmatprep.subr.bf16.mxu0 0
    %192 = vmatpush1.bf16.xpose.msra.mxu0 %v154
    %193 = vmatprep.subr.bf16.mxu0 0
    %194 = vmatpush1.bf16.xpose.msra.mxu0 %v155
    %195 = vmatprep.subr.bf16.mxu0 0
    %196 = vmatpush1.bf16.xpose.msra.mxu0 %v156
    %197 = vmatprep.subr.bf16.mxu0 0
    %198 = vmatpush1.bf16.xpose.msra.mxu0 %v157
    %199 = vmatprep.subr.bf16.mxu0 0
    %200 = vmatpush1.bf16.xpose.msra.mxu0 %v158
    %201 = vmatprep.subr.bf16.mxu0 0
    %202 = vmatpush1.bf16.xpose.msra.mxu0 %v159
    %203 = vmatprep.subr.bf16.mxu0 0
    %204 = vmatpush1.bf16.xpose.msra.mxu0 %v160
    %205 = vmatprep.subr.bf16.mxu0 0
    %206 = vmatpush1.bf16.xpose.msra.mxu0 %v161
    %207 = vmatprep.subr.bf16.mxu0 0
    %208 = vmatpush1.bf16.xpose.msra.mxu0 %v162
    %209 = vmatprep.subr.bf16.mxu0 0
    %210 = vmatpush1.bf16.xpose.msra.mxu0 %v163
    %211 = vmatprep.subr.bf16.mxu0 0
    %212 = vmatpush1.bf16.xpose.msra.mxu0 %v164
    %213 = vmatprep.mubr.bf16.mxu0 0
    %214 = vmatmul.mubr.bf16.gmra.mrb[0].mxu0 %v50
    %v215 = vpop.f32.mrb[0].mxu0
    %v216 = vadd.f32 0.0, %v215
    %v217 = vpop.f32.mrb[0].mxu0
    %v218 = vadd.f32 0.0, %v217
    %v219 = vpop.f32.mrb[0].mxu0
    %v220 = vpop.f32.mrb[0].mxu0
    %221 = vdwg.mxu0
    %v222 = vadd.f32 %v51, %v216
    %v223 = vadd.f32 %v52, %v218
    %224 = vst [vmem:[#allocation2] sm:$0xff] %v222
    %225 = vst [vmem:[#allocation2 + $0x8] sm:$0xff] %v223
    // Predicated region
    $region22: #{dense_mlp_forward.1} parent=1 // pred_check
      %p226 = pneg %p39
    $region23: #{dense_mlp_forward.1} parent=1 // pred_check_branch
      %228 = sbr.rel (%p226) target = $region25
    $region24: #{dense_mlp_forward.1} parent=1 // pred_region
      %v229 = vld [vmem:[#allocation2] sm:$0xff]
      %v230 = vld [vmem:[#allocation2 + $0x8] sm:$0xff]
      %231 = vst [vmem:[#allocation8] sm:$0xff] %v229
      %232 = vst [vmem:[#allocation8 + $0x8] sm:$0xff] %v230
    $region25: #{dense_mlp_forward.1} parent=1 // pred_fallthru
      _
    // Predicated region
    $region26: #{dense_mlp_forward.1} parent=1 // pred_check
      _
    $region27: #{dense_mlp_forward.1} parent=1 // pred_check_branch
      %234 = sbr.rel (0) target = $region29
    $region28: #{dense_mlp_forward.1} parent=1 // pred_region
      %s236 = ssub.s32 256, 256
      %237 = vsyncadd [#allocation5], %s236
      %s239 = sshll.u32 [#allocation8], 4
      %s240 = int_to_ptr.vmem [resolvable:$true] %s239
      %242 = dma.vmem_to_hbm [thread:$0]  %s240, 256, %s2, [#allocation5]
    $region29: #{dense_mlp_forward.1} parent=1 // pred_fallthru
      _
    // Predicated region
    $region30: #{dense_mlp_forward.1} parent=1 // pred_check
      _
    $region31: #{dense_mlp_forward.1} parent=1 // pred_check_branch
      %244 = sbr.rel (0) target = $region33
    $region32: #{dense_mlp_forward.1} parent=1 // pred_region
      %245 = dma.done [#allocation5], 256
    $region33: #{dense_mlp_forward.1} parent=1 // pred_fallthru
      _
    %246 = vsyncpa [#allocation4], 1
    %247 = vsyncpa [#allocation7], 1
    %248 = vsyncpa [#allocation5], 1

</llo_original>
